<compile_context>
chip_gen: v7x
topology: tpu7x:2x2x1
jax: 0.10.0
libtpu: 0.0.40
codegen_flags: <defaults>
</compile_context>

<pallas_src>
import math

import jax
import jax.numpy as jnp
from jax.experimental import pallas as pl
from jax.experimental.pallas import tpu as pltpu


def _fma_kernel(x_ref, ab_ref, o_ref):
    # x_ref:  (tile_rows, lane_dim)  input dtype
    # ab_ref: (2, lane_dim)          f32, row 0 = a (scale), row 1 = b (offset)
    # o_ref:  (tile_rows, lane_dim)  input dtype
    x = x_ref[...].astype(jnp.float32)
    a = ab_ref[0:1, :]
    b = ab_ref[1:2, :]
    o_ref[...] = (x * a + b).astype(o_ref.dtype)


def _round_up(v: int, m: int) -> int:
    return ((v + m - 1) // m) * m


def _pick_vmem_budget():
    """Per-generation block-size / scoped-VMEM choices for this HBM-bound kernel."""
    try:
        cap = pltpu.get_tpu_info().vmem_capacity_bytes
    except Exception:
        cap = None
    if cap is not None and cap >= (96 << 20):
        # v5e / v6e: 128 MiB physical VMEM -> big blocks, 64 MiB scoped limit.
        # Live VMEM ~ 4x block (double-buffered in+out) ~= 32 MiB, fits easily.
        return 8 << 20, 64 << 20
    # v7x (64 MiB VMEM per TC) or unknown generation: stay conservative.
    return 5 << 20, 48 << 20


def meanvar_normalize(x, scale, offset, denormalize: bool, *,
                      target_block_bytes=None, vmem_limit_bytes=None):
    """x: [..., dim] (any float dtype); scale, offset: float32 [dim].

    Matches MeanVarNormalizer.forward:
      denormalize=False: x * scale + offset
      denormalize=True:  (x - offset) / scale
    Output has the same shape and dtype as x.
    """
    orig_shape = x.shape
    orig_dtype = x.dtype
    dim = orig_shape[-1]
    assert scale.shape == (dim,) and offset.shape == (dim,)

    # Zero-sized inputs: nothing to do.
    if x.size == 0:
        return x

    blk_default, vmem_default = _pick_vmem_budget()
    if target_block_bytes is None:
        target_block_bytes = blk_default
    if vmem_limit_bytes is None:
        vmem_limit_bytes = vmem_default

    scale = scale.astype(jnp.float32)
    offset = offset.astype(jnp.float32)

    # Fold both paths into a single FMA: o = x * a + b (precompute on (dim,)).
    # Note: denormalize uses a=1/scale, b=-offset/scale (one extra rounding vs
    # the literal (x - offset)/scale, fine at f32 tolerances).
    if denormalize:
        a_vec = 1.0 / scale
        b_vec = -offset / scale
    else:
        a_vec = scale
        b_vec = offset

    rows = 1
    for s in orig_shape[:-1]:
        rows *= s

    # Lane-dense folding: make the trailing (lane) dim a multiple of 128 by
    # folding g consecutive rows into the lane axis; pad up to g-1 rows so the
    # whole tensor always gets full-width stores.
    g = 1
    if dim % 128 != 0:
        g = 128 // math.gcd(dim, 128)
    rows_p = _round_up(rows, g)
    pad_rows = rows_p - rows
    lane_dim = g * dim
    rows_f = rows_p // g

    x_flat = x.reshape(rows, dim)
    if pad_rows:
        x_flat = jnp.pad(x_flat, ((0, pad_rows), (0, 0)))
    x2 = x_flat.reshape(rows_f, lane_dim)

    if g > 1:
        ab = jnp.stack([jnp.tile(a_vec, g), jnp.tile(b_vec, g)], axis=0)
    else:
        ab = jnp.stack([a_vec, b_vec], axis=0)  # (2, lane_dim) f32

    # --- block / grid selection -------------------------------------------
    # Bytes-only governed tile size (no fixed row cap). Guarantee >= 2 grid
    # steps (even count) whenever rows permit so megacore sharding balances.
    itemsize = jnp.dtype(orig_dtype).itemsize
    bytes_per_row = max(lane_dim * itemsize, 1)
    if rows_f < 16:
        tile_rows = rows_f  # full-extent block (allowed even if not mult. of 8)
    else:
        n_blocks = max(2, pl.cdiv(rows_f * bytes_per_row, target_block_bytes))
        if n_blocks % 2:
            n_blocks += 1
        tile_rows = _round_up(pl.cdiv(rows_f, n_blocks), 8)
    grid = (pl.cdiv(rows_f, tile_rows),)

    cost = pl.CostEstimate(
        flops=2 * rows * dim,
        transcendentals=0,
        bytes_accessed=int(2 * x2.size * itemsize + ab.size * 4),
    )

    out = pl.pallas_call(
        _fma_kernel,
        out_shape=jax.ShapeDtypeStruct((rows_f, lane_dim), orig_dtype),
        grid_spec=pltpu.PrefetchScalarGridSpec(
            num_scalar_prefetch=0,
            grid=grid,
            in_specs=[
                pl.BlockSpec((tile_rows, lane_dim), lambda i: (i, 0)),
                pl.BlockSpec((2, lane_dim), lambda i: (0, 0)),
            ],
            out_specs=pl.BlockSpec((tile_rows, lane_dim), lambda i: (i, 0)),
        ),
        compiler_params=pltpu.CompilerParams(
            dimension_semantics=("parallel",),   # shards rows across TCs on v7x
            vmem_limit_bytes=vmem_limit_bytes,
        ),
        cost_estimate=cost,
    )(x2, ab)

    out_flat = out.reshape(rows_p, dim)
    if pad_rows:
        out_flat = out_flat[:rows]
    return out_flat.reshape(orig_shape)


def make_params(dim: int, key):
    """Deterministic synthetic parameters mimicking set_from_mv_t()."""
    k_mean, k_std = jax.random.split(key)
    mean_t = jax.random.normal(k_mean, (dim,), dtype=jnp.float32)
    std_t = jax.random.uniform(k_std, (dim,), dtype=jnp.float32, minval=0.5, maxval=2.0)
    std_t = jnp.maximum(std_t, 1e-8)
    normalizer_scale = 1.0 / std_t
    normalizer_offset = -normalizer_scale * mean_t
    return normalizer_scale, normalizer_offset


if __name__ == "__main__":
    key = jax.random.PRNGKey(0)
    k_x, k_p, k_x2, k_x3 = jax.random.split(key, 4)

    batch, seq, dim = 2, 8, 32
    x = jax.random.normal(k_x, (batch, seq, dim), dtype=jnp.float32)
    scale, offset = make_params(dim, k_p)

    # normalize path
    y = meanvar_normalize(x, scale, offset, denormalize=False)
    y = jax.block_until_ready(y)
    y_ref = x * scale + offset

    # denormalize path
    z = meanvar_normalize(y, scale, offset, denormalize=True)
    z = jax.block_until_ready(z)
    z_ref = (y_ref - offset) / scale

    assert y.dtype == x.dtype and y.shape == x.shape
    assert jnp.allclose(y, y_ref, atol=1e-5, rtol=1e-5)
    assert jnp.allclose(z, z_ref, atol=1e-5, rtol=1e-5)
    assert jnp.allclose(z, x, atol=1e-4, rtol=1e-4)  # round-trip recovers input

    # ragged shape (rows not divisible by g): exercises the row-padding path
    x_odd = jax.random.normal(k_x2, (3, 5, dim), dtype=jnp.float32)
    y_odd = jax.block_until_ready(
        meanvar_normalize(x_odd, scale, offset, denormalize=False))
    assert y_odd.shape == x_odd.shape
    assert jnp.allclose(y_odd, x_odd * scale + offset, atol=1e-5, rtol=1e-5)

    # shape large enough to take the multi-block (>=2 grid steps) path
    x_big = jax.random.normal(k_x3, (64, dim), dtype=jnp.float32)
    y_big = jax.block_until_ready(
        meanvar_normalize(x_big, scale, offset, denormalize=False))
    assert jnp.allclose(y_big, x_big * scale + offset, atol=1e-5, rtol=1e-5)

    # zero-sized input guard
    x_zero = jnp.zeros((0, dim), dtype=jnp.float32)
    y_zero = meanvar_normalize(x_zero, scale, offset, denormalize=False)
    assert y_zero.shape == x_zero.shape and y_zero.dtype == x_zero.dtype

    print("KERNEL_OK")
</pallas_src>

<mosaic_0001>
module attributes {stable_mosaic.version = 11 : i64} {
  func.func @_fma_kernel(%arg0: i32, %arg1: memref<4x128xf32, #tpu.memory_space<vmem>>, %arg2: memref<2x128xf32, #tpu.memory_space<vmem>>, %arg3: memref<4x128xf32, #tpu.memory_space<vmem>>) attributes {dimension_semantics = [#tpu.dimension_semantics<parallel>], iteration_bounds = array<i64: 1>, scalar_prefetch = 0 : i64, scratch_operands = 0 : i64, tpu.core_type = #tpu.core_type<tc>, window_params = [{transform_indices = @transform_0, window_bounds = array<i64: 4, 128>}, {pipeline_mode = #tpu.pipeline_mode<synchronous>, transform_indices = @transform_1, window_bounds = array<i64: 2, 128>}, {transform_indices = @transform_2, window_bounds = array<i64: 4, 128>}]} {
    %c0 = arith.constant 0 : index
    %c0_0 = arith.constant 0 : index
    %0 = vector.load %arg1[%c0, %c0_0] : memref<4x128xf32, #tpu.memory_space<vmem>>, vector<4x128xf32>
    %c0_1 = arith.constant 0 : index
    %c0_2 = arith.constant 0 : index
    %1 = vector.load %arg2[%c0_1, %c0_2] : memref<2x128xf32, #tpu.memory_space<vmem>>, vector<1x128xf32>
    %c1 = arith.constant 1 : index
    %c0_3 = arith.constant 0 : index
    %2 = vector.load %arg2[%c1, %c0_3] : memref<2x128xf32, #tpu.memory_space<vmem>>, vector<1x128xf32>
    %3 = vector.broadcast %1 : vector<1x128xf32> to vector<4x128xf32>
    %4 = arith.mulf %0, %3 : vector<4x128xf32>
    %5 = vector.broadcast %2 : vector<1x128xf32> to vector<4x128xf32>
    %6 = arith.addf %4, %5 : vector<4x128xf32>
    %c0_4 = arith.constant 0 : index
    %c0_5 = arith.constant 0 : index
    %7 = vector.load %arg3[%c0_4, %c0_5] : memref<4x128xf32, #tpu.memory_space<vmem>>, vector<4x128xf32>
    tpu.vector_store %arg3[%c0_4, %c0_5], %6 {strides = array<i32>} : memref<4x128xf32, #tpu.memory_space<vmem>>, vector<4x128xf32>,
    return
  }
  func.func @transform_0(%arg0: i32) -> (i32, i32) {
    %c0_i32 = arith.constant 0 : i32
    %c0_i32_0 = arith.constant 0 : i32
    return %arg0, %c0_i32 : i32, i32
  }
  func.func @transform_1(%arg0: i32) -> (i32, i32) {
    %c0_i32 = arith.constant 0 : i32
    %c0_i32_0 = arith.constant 0 : i32
    %c0_i32_1 = arith.constant 0 : i32
    return %c0_i32, %c0_i32_0 : i32, i32
  }
  func.func @transform_2(%arg0: i32) -> (i32, i32) {
    %c0_i32 = arith.constant 0 : i32
    %c0_i32_0 = arith.constant 0 : i32
    return %arg0, %c0_i32 : i32, i32
  }
}

</mosaic_0001>

<llo_original>
// kernel: tpu_custom_call.1
$region0: #{tpu_custom_call.1}
  #allocation0 [shape = 'u32[]', space=smem, size = 0x4, offset = 0x4, fixed_abs, tag = 'smem constant byte address 0x4 - core index']
  #allocation1 [shape = 'u32[144,128]{1,0:T(1,128)}', space=vmem, size = 0x12000, scoped, tag = 'internal scratch']
  %s0 = inlined_call_operand.hbm [shape: f32[4,128], index: 0, kind: input, shape index: {}]
  %s1 = inlined_call_operand.vmem [shape: f32[2,128], index: 1, kind: input, shape index: {}]
  %s2 = inlined_call_operand.hbm [shape: f32[4,128], index: 2, kind: output, shape index: {}]
  %s3 = sld [smem:[#allocation0]]
  $region22: #{tpu_custom_call.1} parent=0
    _
  %s5 = ssub.s32 1, %s3
  %s6 = scalar_select 0, %s5, %s3
  $region1: #{tpu_custom_call.1} parent=0
    #allocation2 [shape = 'u8[2048]{0}', space=vmem, size = 0x800, scoped, tag = 'input window, operand 0, single buffered']
    #allocation3 [shape = 's32[1]{0}', space=sflag, size = 0x4, scoped, tag = 'scoped memory for tpu_custom_call.1']
    #allocation4 [shape = 's32[1]{0}', space=sflag, size = 0x4, scoped, tag = 'scoped memory for tpu_custom_call.1']
    #allocation5 [shape = 'u8[2048]{0}', space=vmem, size = 0x800, scoped, tag = 'output window, operand 0, single buffered']
    %7 = vsyncpa [#allocation3], 0
    %8 = vsyncpa [#allocation4], 0
    // Predicated region
    $region2: #{tpu_custom_call.1} parent=1 // pred_check
      _
    $region3: #{tpu_custom_call.1} parent=1 // pred_check_branch
      %10 = sbr.rel (0) target = $region5
    $region4: #{tpu_custom_call.1} parent=1 // pred_region
      %s12 = ssub.s32 64, 64
      %13 = vsyncadd [#allocation3], %s12
      %s15 = sshll.u32 [#allocation2], 4
      %s16 = int_to_ptr.vmem [resolvable:$true] %s15
      %18 = dma.hbm_to_vmem [thread:$0]  %s0, 64, %s16, [#allocation3]
    $region5: #{tpu_custom_call.1} parent=1 // pred_fallthru
      _
    // Predicated region
    $region6: #{tpu_custom_call.1} parent=1 // pred_check
      _
    $region7: #{tpu_custom_call.1} parent=1 // pred_check_branch
      %20 = sbr.rel (0) target = $region9
    $region8: #{tpu_custom_call.1} parent=1 // pred_region
      _
    $region9: #{tpu_custom_call.1} parent=1 // pred_fallthru
      _
    // Predicated region
    $region10: #{tpu_custom_call.1} parent=1 // pred_check
      _
    $region11: #{tpu_custom_call.1} parent=1 // pred_check_branch
      %22 = sbr.rel (0) target = $region13
    $region12: #{tpu_custom_call.1} parent=1 // pred_region
      %23 = dma.done [#allocation3], 64
    $region13: #{tpu_custom_call.1} parent=1 // pred_fallthru
      _
    %v24 = vld [vmem:[#allocation2] sm:$0xf]
    %v25 = vld [vmem:[%s1] sm:$0x1]
    %v26 = vld [vmem:[%s1 + $0x1] sm:$0x1]
    %v27 = vlaneseq
    %v28 = vshrl.u32 %v27, 7
    %v29 = vsub.s32 0, %v28
    %v30 = vrot.slane %v25, %v29
    %v31 = vmul.f32 %v24, %v30
    %v32 = vlaneseq
    %v33 = vshrl.u32 %v32, 7
    %v34 = vsub.s32 0, %v33
    %v35 = vrot.slane %v26, %v34
    %v36 = vadd.f32 %v31, %v35
    %37 = vst [vmem:[#allocation5] sm:$0xf] %v36
    // Predicated region
    $region14: #{tpu_custom_call.1} parent=1 // pred_check
      _
    $region15: #{tpu_custom_call.1} parent=1 // pred_check_branch
      %39 = sbr.rel (0) target = $region17
    $region16: #{tpu_custom_call.1} parent=1 // pred_region
      %s41 = ssub.s32 64, 64
      %42 = vsyncadd [#allocation4], %s41
      %s44 = sshll.u32 [#allocation5], 4
      %s45 = int_to_ptr.vmem [resolvable:$true] %s44
      %47 = dma.vmem_to_hbm [thread:$0]  %s45, 64, %s2, [#allocation4]
    $region17: #{tpu_custom_call.1} parent=1 // pred_fallthru
      _
    // Predicated region
    $region18: #{tpu_custom_call.1} parent=1 // pred_check
      _
    $region19: #{tpu_custom_call.1} parent=1 // pred_check_branch
      %49 = sbr.rel (0) target = $region21
    $region20: #{tpu_custom_call.1} parent=1 // pred_region
      %50 = dma.done [#allocation4], 64
    $region21: #{tpu_custom_call.1} parent=1 // pred_fallthru
      _
    %51 = vsyncpa [#allocation3], 1
    %52 = vsyncpa [#allocation4], 1

</llo_original>
